<compile_context>
chip_gen: v6e
topology: v6e:2x2x1
jax: 0.10.0
libtpu: 0.0.40
codegen_flags: <defaults>
</compile_context>

<pallas_src>
import numpy as np
import jax
import jax.numpy as jnp
from jax.experimental import pallas as pl
from jax.experimental.pallas import tpu as pltpu


_VMEM = pl.BlockSpec(memory_space=pltpu.MemorySpace.VMEM)
_POOL_TAPS = ((0, 0), (0, 1), (1, 0), (1, 1))


# ---------------------------------------------------------------------------
# Setup-time packing (host-side numpy, once per weight set).
# ---------------------------------------------------------------------------

def build_packed_weights(params, n, m, in_c, heads, action_space):
    """Pack every weight/bias into one f32 buffer + return the static layout."""
    w1 = np.asarray(params["conv1_w"], np.float32); b1 = np.asarray(params["conv1_b"], np.float32)
    w2 = np.asarray(params["conv2_w"], np.float32); b2 = np.asarray(params["conv2_b"], np.float32)
    w3 = np.asarray(params["conv3_w"], np.float32); b3 = np.asarray(params["conv3_b"], np.float32)
    C1, C2, C3 = w1.shape[-1], w2.shape[-1], w3.shape[-1]

    PH, PW = (n - 1) // 2, (m - 1) // 2        # pooled map
    OH2, OW2 = PH - 1, PW - 1                  # conv2 output
    OH3, OW3 = OH2 - 1, OW2 - 1                # conv3 output
    F1 = PH * PW * C1                          # conv1/pool features (144)
    F2 = OH2 * OW2 * C2                        # conv2 features (128)
    EMB = C3 * OH3 * OW3                       # embedding (64)
    K1 = PH * PW * 4 * in_c                    # im2col row width (108)
    HA = heads * action_space
    HV = HA + 1                                # heads | value output columns
    HC = 64 + 64                               # hidden | critic-fc1 columns
    XW = 128                                   # packed-input lane width

    assert K1 + 1 + heads <= XW, "im2col obs + ones column + g must fit 128 lanes"
    W_COLS = max(F1, F2, HC, EMB, 128 + HV)
    assert F2 >= HC, "heads/critic-fc2 weight is overlaid on the conv3 rows"

    # row offsets (all multiples of 8 by construction)
    r_w1 = 0
    r_a2 = r_w1 + XW
    r_a3 = r_a2 + F1
    r_hc = r_a3 + F2
    r_b = r_hc + EMB
    rows = -(-(r_b + 4) // 8) * 8
    W = np.zeros((rows, W_COLS), np.float32)

    # conv1 as block-diagonal im2col weight (+ bias row via ones column);
    # the 2x2 max-pool is folded by evaluating all 4 pool taps at once.
    for ph in range(PH):
        for pw_ in range(PW):
            p = ph * PW + pw_
            for di in range(2):
                for dj in range(2):
                    for c in range(in_c):
                        r = r_w1 + p * 4 * in_c + (di * 2 + dj) * in_c + c
                        W[r, p * C1:(p + 1) * C1] = w1[di, dj, c, :]
    W[r_w1 + K1, :F1] = np.tile(b1, PH * PW)

    # conv2 Toeplitz: input (PH,PW,C1) hwc-flat -> output (OH2,OW2,C2) hwc-flat
    for oh in range(OH2):
        for ow in range(OW2):
            col = (oh * OW2 + ow) * C2
            for di in range(2):
                for dj in range(2):
                    r = r_a2 + ((oh + di) * PW + (ow + dj)) * C1
                    W[r:r + C1, col:col + C2] = w2[di, dj]

    # conv3 Toeplitz, output columns in NCHW-flatten order (matches torch reshape)
    for oh in range(OH3):
        for ow in range(OW3):
            for di in range(2):
                for dj in range(2):
                    r = r_a3 + ((oh + di) * OW2 + (ow + dj)) * C2
                    for o in range(C3):
                        W[r:r + C2, o * OH3 * OW3 + oh * OW3 + ow] = w3[di, dj, :, o]

    # actor heads + critic-fc2 fused block-diagonal (HC, HV), stored in the
    # spare lanes [128:128+HV) of the conv3 rows (lane-tile-aligned start).
    hv_col = 128
    W[r_a3:r_a3 + 64, hv_col:hv_col + HA] = np.asarray(params["heads_w"], np.float32)
    W[r_a3 + 64:r_a3 + 128, hv_col + HA] = np.asarray(params["critic_w2"], np.float32)[:, 0]

    # hidden | critic-fc1 fused (EMB, 128)
    W[r_hc:r_hc + EMB, 0:64] = np.asarray(params["hidden_w"], np.float32)
    W[r_hc:r_hc + EMB, 64:128] = np.asarray(params["critic_w1"], np.float32)

    # bias rows: conv2, conv3, hidden|critic1, heads|critic2
    W[r_b + 0, :F2] = np.tile(b2, OH2 * OW2)
    W[r_b + 1, :EMB] = np.repeat(b3, OH3 * OW3)
    W[r_b + 2, 0:64] = np.asarray(params["hidden_b"], np.float32)
    W[r_b + 2, 64:128] = np.asarray(params["critic_b1"], np.float32)
    W[r_b + 3, 0:HA] = np.asarray(params["heads_b"], np.float32)
    W[r_b + 3, HA] = np.asarray(params["critic_b2"], np.float32)[0]

    # im2col gather indices into the hwc-flat observation, one row per pool tap
    idx = np.zeros((4, K1), np.int32)
    for k, (pi, pj) in enumerate(_POOL_TAPS):
        for ph in range(PH):
            for pw_ in range(PW):
                p = ph * PW + pw_
                for di in range(2):
                    for dj in range(2):
                        for c in range(in_c):
                            j = p * 4 * in_c + (di * 2 + dj) * in_c + c
                            idx[k, j] = ((2 * ph + pi + di) * m + (2 * pw_ + pj + dj)) * in_c + c

    layout = dict(XW=XW, F1=F1, F2=F2, EMB=EMB, HA=HA, HV=HV, HC=HC, K1=K1,
                  r_w1=r_w1, r_a2=r_a2, r_a3=r_a3, r_hv=r_a3, hv_col=hv_col,
                  r_hc=r_hc, r_b=r_b, heads=heads, act=action_space, idx=idx)
    return jnp.asarray(W), layout


# ---------------------------------------------------------------------------
# Fused Pallas kernel (gridless, everything VMEM-resident) + jitted wrapper.
# ---------------------------------------------------------------------------

def make_forward(layout):
    XW, F1, F2, EMB = layout["XW"], layout["F1"], layout["F2"], layout["EMB"]
    HA, HV, HC, K1 = layout["HA"], layout["HV"], layout["HC"], layout["K1"]
    r_w1, r_a2, r_a3 = layout["r_w1"], layout["r_a2"], layout["r_a3"]
    r_hv, hv_col = layout["r_hv"], layout["hv_col"]
    r_hc, r_b = layout["r_hc"], layout["r_b"]
    heads, act = layout["heads"], layout["act"]
    idx = layout["idx"]
    f32 = jnp.float32

    def kernel(xg_ref, w_ref, out_ref):
        x = xg_ref[...]                                    # (4B, 128)
        B = x.shape[0] // 4

        # conv1 (+bias via ones column) for all 4 pool taps in one matmul,
        # then max over the tap row-blocks and ReLU (ReLU/maxpool commute).
        y1 = jnp.dot(x, w_ref[r_w1:r_w1 + XW, 0:F1], preferred_element_type=f32)
        p = jnp.maximum(jnp.maximum(y1[0 * B:1 * B], y1[1 * B:2 * B]),
                        jnp.maximum(y1[2 * B:3 * B], y1[3 * B:4 * B]))
        p = jnp.maximum(p, 0.0)                            # (B, F1)

        # conv2 + ReLU
        h2 = jnp.maximum(
            jnp.dot(p, w_ref[r_a2:r_a2 + F1, 0:F2], preferred_element_type=f32)
            + w_ref[r_b:r_b + 1, 0:F2], 0.0)               # (B, F2)

        # conv3 + ReLU -> embedding (columns already in NCHW-flatten order)
        emb = jnp.maximum(
            jnp.dot(h2, w_ref[r_a3:r_a3 + F2, 0:EMB], preferred_element_type=f32)
            + w_ref[r_b + 1:r_b + 2, 0:EMB], 0.0)          # (B, EMB)

        # hidden (emb->64) and critic fc1 (emb->64) fused: one 128-lane tanh matmul
        hc = jnp.tanh(
            jnp.dot(emb, w_ref[r_hc:r_hc + EMB, 0:HC], preferred_element_type=f32)
            + w_ref[r_b + 2:r_b + 3, 0:HC])                # (B, 128)

        # all actor heads + critic fc2 fused block-diagonal -> (B, heads*act+1)
        hv = (jnp.dot(hc, w_ref[r_hv:r_hv + HC, hv_col:hv_col + HV],
                      preferred_element_type=f32)
              + w_ref[r_b + 3:r_b + 4, 0:HV])

        # torch: output[dist_choose][0] -> row 0 of the chosen head, per batch
        g = x[0:B, XW - heads:XW]                          # one-hot (B, heads)
        dist = g[:, 0:1] * hv[0:1, 0:act]
        for k in range(1, heads):                          # tiny VPU selects
            dist = dist + g[:, k:k + 1] * hv[0:1, k * act:(k + 1) * act]

        # numerically-stable log-softmax over the action dim
        mx = jnp.max(dist, axis=-1, keepdims=True)
        lse = jnp.log(jnp.sum(jnp.exp(dist - mx), axis=-1, keepdims=True))

        # single lane-dense output buffer: [log-probs | value | zero pad]
        out_ref[...] = jnp.zeros_like(out_ref)
        out_ref[:, 0:act] = (dist - mx) - lse
        out_ref[:, act:act + 1] = hv[:, HA:HA + 1]

    @jax.jit
    def forward(w_packed, obs, g):
        B = obs.shape[0]
        # host-side im2col of the (tiny) observation, one row block per pool tap
        x_taps = obs.reshape(B, -1)[:, idx]                # (B, 4, K1)
        x_taps = jnp.transpose(x_taps, (1, 0, 2)).reshape(4 * B, K1)
        xg = jnp.zeros((4 * B, XW), jnp.float32)
        xg = xg.at[:, :K1].set(x_taps)
        xg = xg.at[:, K1].set(1.0)                         # conv1-bias ones column
        xg = xg.at[:B, XW - heads:].set(g)                 # one-hot head choice

        out = pl.pallas_call(
            kernel,
            out_shape=jax.ShapeDtypeStruct((B, 128), jnp.float32),
            in_specs=[_VMEM, _VMEM],
            out_specs=_VMEM,
        )(xg, w_packed)
        # TODO(synk): if B ever grows beyond toy sizes, add a batch grid axis
        # with dimension_semantics=("parallel",) so v7x's second TensorCore is used.
        return out[:, :act], out[:, act]

    return forward


# ---------------------------------------------------------------------------
# Deterministic parameter init (shapes from the module's __init__).
# ---------------------------------------------------------------------------

def init_params(key, in_c, n, m, action_space, heads):
    emb = ((n - 1) // 2 - 2) * ((m - 1) // 2 - 2) * 64
    ks = jax.random.split(key, 14)

    def w(k, shape, scale=0.1):
        return jax.random.normal(k, shape, jnp.float32) * scale

    params = dict(
        conv1_w=w(ks[0], (2, 2, in_c, 16), 0.2), conv1_b=w(ks[1], (16,)),
        conv2_w=w(ks[2], (2, 2, 16, 32)),        conv2_b=w(ks[3], (32,)),
        conv3_w=w(ks[4], (2, 2, 32, 64)),        conv3_b=w(ks[5], (64,)),
        hidden_w=w(ks[6], (emb, 64)),            hidden_b=w(ks[7], (64,)),
        heads_w=w(ks[8], (64, heads * action_space)),
        heads_b=w(ks[9], (heads * action_space,)),
        critic_w1=w(ks[10], (emb, 64)),          critic_b1=w(ks[11], (64,)),
        critic_w2=w(ks[12], (64, 1)),            critic_b2=w(ks[13], (1,)),
    )
    # NOTE: the base-class `actor` head exists in __init__ but is unused in
    # Multi_head_Communication_Net.forward, so it is omitted here.
    return params, emb


def choose_head_indices(skills, heads):
    """Host-side replication of the skill -> head selection logic."""
    idx = []
    for s in skills:
        if s is None:
            idx.append(int(np.random.choice(heads)))
        elif s[0]['action'] == 0:
            idx.append(0)
        elif s[0]['action'] == 1:
            idx.append(1)
        elif s[0]['action'] == 2:
            idx.append(2)
        elif s[0]['action'] == 4:
            idx.append(3)
        else:
            raise ValueError(f"unsupported skill action: {s[0]['action']}")
    return np.asarray(idx, dtype=np.int32)


# ---------------------------------------------------------------------------
# Pure-JAX reference (original params, direct conv / linear ops) for checking.
# ---------------------------------------------------------------------------

def reference_forward(params, obs, choose_idx, heads, action_space):
    prec = jax.lax.Precision.HIGHEST

    def conv_relu(x, w, b):
        y = jax.lax.conv_general_dilated(
            x, w, window_strides=(1, 1), padding='VALID',
            dimension_numbers=('NHWC', 'HWIO', 'NHWC'), precision=prec)
        return jnp.maximum(y + b, 0.0)

    x = conv_relu(obs, params["conv1_w"], params["conv1_b"])
    x = jax.lax.reduce_window(x, -jnp.inf, jax.lax.max,
                              (1, 2, 2, 1), (1, 2, 2, 1), 'VALID')
    x = conv_relu(x, params["conv2_w"], params["conv2_b"])
    x = conv_relu(x, params["conv3_w"], params["conv3_b"])
    B = obs.shape[0]
    emb = jnp.transpose(x, (0, 3, 1, 2)).reshape(B, -1)   # NCHW flatten

    dot = lambda a, w: jnp.dot(a, w, precision=prec)
    hidden = jnp.tanh(dot(emb, params["hidden_w"]) + params["hidden_b"])
    heads_out = dot(hidden, params["heads_w"]) + params["heads_b"]   # (B, heads*A)
    dist_x = heads_out[0].reshape(heads, action_space)[choose_idx]    # row 0, chosen head
    logits = jax.nn.log_softmax(dist_x, axis=-1)
    c = jnp.tanh(dot(emb, params["critic_w1"]) + params["critic_b1"])
    value = (dot(c, params["critic_w2"]) + params["critic_b2"])[:, 0]
    return logits, value


# ---------------------------------------------------------------------------
# Main
# ---------------------------------------------------------------------------

if __name__ == "__main__":
    np.random.seed(0)
    key = jax.random.PRNGKey(0)

    # obs_space['image'] = (7, 7, 3) (minigrid-style), action_space = 2, 4 heads
    n, m, in_c = 7, 7, 3
    action_space = 2
    heads = 4
    B = 2

    params, emb_size = init_params(key, in_c, n, m, action_space, heads)

    k_obs = jax.random.fold_in(key, 123)
    obs_batch = jax.random.uniform(k_obs, (B, n, m, in_c), jnp.float32)

    # obs_skill: list of (obs, skill) like the PyTorch forward expects
    obs_skill = [
        (obs_batch[0], ({'action': 0},)),
        (obs_batch[1], ({'action': 4},)),
    ]
    skills = [os[-1] for os in obs_skill]
    obs = jnp.stack([os[0] for os in obs_skill])             # (B, n, m, c) NHWC
    choose_idx = choose_head_indices(skills, heads)           # (B,) host ints
    g = jnp.asarray(np.eye(heads, dtype=np.float32)[choose_idx])   # (B, heads) one-hot

    # One-time weight lowering: everything packed into a single VMEM buffer.
    w_packed, layout = build_packed_weights(params, n, m, in_c, heads, action_space)
    forward = make_forward(layout)

    logits, value = forward(w_packed, obs, g)
    logits = jax.block_until_ready(logits)
    value = jax.block_until_ready(value)

    # Reference check against the direct conv/linear formulation.
    ref_logits, ref_value = reference_forward(params, obs, choose_idx,
                                              heads, action_space)
    ref_logits = jax.block_until_ready(ref_logits)
    ref_value = jax.block_until_ready(ref_value)

    assert logits.shape == (B, action_space)
    assert value.shape == (B,)
    assert np.allclose(np.asarray(logits), np.asarray(ref_logits),
                       atol=2e-4, rtol=2e-4)
    assert np.allclose(np.asarray(value), np.asarray(ref_value),
                       atol=2e-4, rtol=2e-4)

    print("KERNEL_OK")
</pallas_src>

<mosaic_0001>
module attributes {stable_mosaic.version = 11 : i64} {
  func.func @kernel(%arg0: memref<8x128xf32, #tpu.memory_space<vmem>>, %arg1: memref<472x144xf32, #tpu.memory_space<vmem>>, %arg2: memref<2x128xf32, #tpu.memory_space<vmem>>) attributes {dimension_semantics = [], scalar_prefetch = 0 : i64, scratch_operands = 0 : i64, tpu.core_type = #tpu.core_type<tc>} {
    %c0 = arith.constant 0 : index
    %c0_0 = arith.constant 0 : index
    %0 = vector.load %arg0[%c0, %c0_0] : memref<8x128xf32, #tpu.memory_space<vmem>>, vector<8x128xf32>
    %c0_1 = arith.constant 0 : index
    %c0_2 = arith.constant 0 : index
    %1 = vector.load %arg1[%c0_1, %c0_2] : memref<472x144xf32, #tpu.memory_space<vmem>>, vector<128x144xf32>
    %cst = arith.constant dense<0.000000e+00> : vector<8x144xf32>
    %2 = tpu.matmul %0, %1, %cst {dimension_numbers = #tpu.dot_dimension_numbers<[1], [0], [0], [1], [0, 0, 1, 1], [], []>} : vector<8x128xf32>, vector<128x144xf32>, vector<8x144xf32> -> vector<8x144xf32>
    %3 = vector.extract_strided_slice %2 {offsets = [0, 0], sizes = [2, 144], strides = [1, 1]} : vector<8x144xf32> to vector<2x144xf32>
    %4 = vector.extract_strided_slice %2 {offsets = [2, 0], sizes = [2, 144], strides = [1, 1]} : vector<8x144xf32> to vector<2x144xf32>
    %5 = arith.maximumf %3, %4 : vector<2x144xf32>
    %6 = vector.extract_strided_slice %2 {offsets = [4, 0], sizes = [2, 144], strides = [1, 1]} : vector<8x144xf32> to vector<2x144xf32>
    %7 = vector.extract_strided_slice %2 {offsets = [6, 0], sizes = [2, 144], strides = [1, 1]} : vector<8x144xf32> to vector<2x144xf32>
    %8 = arith.maximumf %6, %7 : vector<2x144xf32>
    %9 = arith.maximumf %5, %8 : vector<2x144xf32>
    %cst_3 = arith.constant 0.000000e+00 : f32
    %10 = vector.broadcast %cst_3 : f32 to vector<2x144xf32>
    %11 = arith.maximumf %9, %10 : vector<2x144xf32>
    %c128 = arith.constant 128 : index
    %c0_4 = arith.constant 0 : index
    %12 = vector.load %arg1[%c128, %c0_4] : memref<472x144xf32, #tpu.memory_space<vmem>>, vector<144x128xf32>
    %cst_5 = arith.constant dense<0.000000e+00> : vector<2x128xf32>
    %13 = tpu.matmul %11, %12, %cst_5 {dimension_numbers = #tpu.dot_dimension_numbers<[1], [0], [0], [1], [0, 0, 1, 1], [], []>} : vector<2x144xf32>, vector<144x128xf32>, vector<2x128xf32> -> vector<2x128xf32>
    %c464 = arith.constant 464 : index
    %c0_6 = arith.constant 0 : index
    %14 = vector.load %arg1[%c464, %c0_6] : memref<472x144xf32, #tpu.memory_space<vmem>>, vector<1x128xf32>
    %15 = vector.broadcast %14 : vector<1x128xf32> to vector<2x128xf32>
    %16 = arith.addf %13, %15 : vector<2x128xf32>
    %cst_7 = arith.constant 0.000000e+00 : f32
    %17 = vector.broadcast %cst_7 : f32 to vector<2x128xf32>
    %18 = arith.maximumf %16, %17 : vector<2x128xf32>
    %c272 = arith.constant 272 : index
    %c0_8 = arith.constant 0 : index
    %19 = vector.load %arg1[%c272, %c0_8] : memref<472x144xf32, #tpu.memory_space<vmem>>, vector<128x64xf32>
    %cst_9 = arith.constant dense<0.000000e+00> : vector<2x64xf32>
    %20 = tpu.matmul %18, %19, %cst_9 {dimension_numbers = #tpu.dot_dimension_numbers<[1], [0], [0], [1], [0, 0, 1, 1], [], []>} : vector<2x128xf32>, vector<128x64xf32>, vector<2x64xf32> -> vector<2x64xf32>
    %c465 = arith.constant 465 : index
    %c0_10 = arith.constant 0 : index
    %21 = vector.load %arg1[%c465, %c0_10] : memref<472x144xf32, #tpu.memory_space<vmem>>, vector<1x64xf32>
    %22 = vector.broadcast %21 : vector<1x64xf32> to vector<2x64xf32>
    %23 = arith.addf %20, %22 : vector<2x64xf32>
    %cst_11 = arith.constant 0.000000e+00 : f32
    %24 = vector.broadcast %cst_11 : f32 to vector<2x64xf32>
    %25 = arith.maximumf %23, %24 : vector<2x64xf32>
    %c400 = arith.constant 400 : index
    %c0_12 = arith.constant 0 : index
    %26 = vector.load %arg1[%c400, %c0_12] : memref<472x144xf32, #tpu.memory_space<vmem>>, vector<64x128xf32>
    %cst_13 = arith.constant dense<0.000000e+00> : vector<2x128xf32>
    %27 = tpu.matmul %25, %26, %cst_13 {dimension_numbers = #tpu.dot_dimension_numbers<[1], [0], [0], [1], [0, 0, 1, 1], [], []>} : vector<2x64xf32>, vector<64x128xf32>, vector<2x128xf32> -> vector<2x128xf32>
    %c466 = arith.constant 466 : index
    %c0_14 = arith.constant 0 : index
    %28 = vector.load %arg1[%c466, %c0_14] : memref<472x144xf32, #tpu.memory_space<vmem>>, vector<1x128xf32>
    %29 = vector.broadcast %28 : vector<1x128xf32> to vector<2x128xf32>
    %30 = arith.addf %27, %29 : vector<2x128xf32>
    %31 = math.tanh %30 : vector<2x128xf32>
    %c272_15 = arith.constant 272 : index
    %c128_16 = arith.constant 128 : index
    %32 = vector.load %arg1[%c272_15, %c128_16] : memref<472x144xf32, #tpu.memory_space<vmem>>, vector<128x9xf32>
    %cst_17 = arith.constant dense<0.000000e+00> : vector<2x9xf32>
    %33 = tpu.matmul %31, %32, %cst_17 {dimension_numbers = #tpu.dot_dimension_numbers<[1], [0], [0], [1], [0, 0, 1, 1], [], []>} : vector<2x128xf32>, vector<128x9xf32>, vector<2x9xf32> -> vector<2x9xf32>
    %c467 = arith.constant 467 : index
    %c0_18 = arith.constant 0 : index
    %34 = vector.load %arg1[%c467, %c0_18] : memref<472x144xf32, #tpu.memory_space<vmem>>, vector<1x9xf32>
    %35 = vector.broadcast %34 : vector<1x9xf32> to vector<2x9xf32>
    %36 = arith.addf %33, %35 : vector<2x9xf32>
    %37 = vector.extract_strided_slice %0 {offsets = [0, 124], sizes = [2, 4], strides = [1, 1]} : vector<8x128xf32> to vector<2x4xf32>
    %38 = vector.extract_strided_slice %37 {offsets = [0, 0], sizes = [2, 1], strides = [1, 1]} : vector<2x4xf32> to vector<2x1xf32>
    %39 = vector.extract_strided_slice %36 {offsets = [0, 0], sizes = [1, 2], strides = [1, 1]} : vector<2x9xf32> to vector<1x2xf32>
    %40 = vector.broadcast %38 : vector<2x1xf32> to vector<2x2xf32>
    %41 = vector.broadcast %39 : vector<1x2xf32> to vector<2x2xf32>
    %42 = arith.mulf %40, %41 : vector<2x2xf32>
    %43 = vector.extract_strided_slice %37 {offsets = [0, 1], sizes = [2, 1], strides = [1, 1]} : vector<2x4xf32> to vector<2x1xf32>
    %44 = vector.extract_strided_slice %36 {offsets = [0, 2], sizes = [1, 2], strides = [1, 1]} : vector<2x9xf32> to vector<1x2xf32>
    %45 = vector.broadcast %43 : vector<2x1xf32> to vector<2x2xf32>
    %46 = vector.broadcast %44 : vector<1x2xf32> to vector<2x2xf32>
    %47 = arith.mulf %45, %46 : vector<2x2xf32>
    %48 = arith.addf %42, %47 : vector<2x2xf32>
    %49 = vector.extract_strided_slice %37 {offsets = [0, 2], sizes = [2, 1], strides = [1, 1]} : vector<2x4xf32> to vector<2x1xf32>
    %50 = vector.extract_strided_slice %36 {offsets = [0, 4], sizes = [1, 2], strides = [1, 1]} : vector<2x9xf32> to vector<1x2xf32>
    %51 = vector.broadcast %49 : vector<2x1xf32> to vector<2x2xf32>
    %52 = vector.broadcast %50 : vector<1x2xf32> to vector<2x2xf32>
    %53 = arith.mulf %51, %52 : vector<2x2xf32>
    %54 = arith.addf %48, %53 : vector<2x2xf32>
    %55 = vector.extract_strided_slice %37 {offsets = [0, 3], sizes = [2, 1], strides = [1, 1]} : vector<2x4xf32> to vector<2x1xf32>
    %56 = vector.extract_strided_slice %36 {offsets = [0, 6], sizes = [1, 2], strides = [1, 1]} : vector<2x9xf32> to vector<1x2xf32>
    %57 = vector.broadcast %55 : vector<2x1xf32> to vector<2x2xf32>
    %58 = vector.broadcast %56 : vector<1x2xf32> to vector<2x2xf32>
    %59 = arith.mulf %57, %58 : vector<2x2xf32>
    %60 = arith.addf %54, %59 : vector<2x2xf32>
    %cst_19 = arith.constant dense<0xFF800000> : vector<2xf32>
    %61 = vector.multi_reduction <maximumf>, %60, %cst_19 [1] : vector<2x2xf32> to vector<2xf32>
    %62 = vector.shape_cast %61 : vector<2xf32> to vector<2x1xf32>
    %63 = vector.broadcast %62 : vector<2x1xf32> to vector<2x2xf32>
    %64 = arith.subf %60, %63 : vector<2x2xf32>
    %65 = math.exp %64 : vector<2x2xf32>
    %cst_20 = arith.constant dense<0.000000e+00> : vector<2xf32>
    %66 = vector.multi_reduction <add>, %65, %cst_20 [1] : vector<2x2xf32> to vector<2xf32>
    %67 = vector.shape_cast %66 : vector<2xf32> to vector<2x1xf32>
    %68 = math.log %67 : vector<2x1xf32>
    %cst_21 = arith.constant 0.000000e+00 : f32
    %69 = vector.broadcast %cst_21 : f32 to vector<2x128xf32>
    %c0_22 = arith.constant 0 : index
    %c0_23 = arith.constant 0 : index
    %70 = vector.load %arg2[%c0_22, %c0_23] : memref<2x128xf32, #tpu.memory_space<vmem>>, vector<2x128xf32>
    tpu.vector_store %arg2[%c0_22, %c0_23], %69 {strides = array<i32>} : memref<2x128xf32, #tpu.memory_space<vmem>>, vector<2x128xf32>,
    %71 = vector.broadcast %62 : vector<2x1xf32> to vector<2x2xf32>
    %72 = arith.subf %60, %71 : vector<2x2xf32>
    %73 = vector.broadcast %68 : vector<2x1xf32> to vector<2x2xf32>
    %74 = arith.subf %72, %73 : vector<2x2xf32>
    %c0_24 = arith.constant 0 : index
    %c0_25 = arith.constant 0 : index
    %75 = vector.load %arg2[%c0_24, %c0_25] : memref<2x128xf32, #tpu.memory_space<vmem>>, vector<2x2xf32>
    tpu.vector_store %arg2[%c0_24, %c0_25], %74 {strides = array<i32>} : memref<2x128xf32, #tpu.memory_space<vmem>>, vector<2x2xf32>,
    %76 = vector.extract_strided_slice %36 {offsets = [0, 8], sizes = [2, 1], strides = [1, 1]} : vector<2x9xf32> to vector<2x1xf32>
    %c0_26 = arith.constant 0 : index
    %c2 = arith.constant 2 : index
    %77 = vector.load %arg2[%c0_26, %c2] : memref<2x128xf32, #tpu.memory_space<vmem>>, vector<2x1xf32>
    tpu.vector_store %arg2[%c0_26, %c2], %76 {strides = array<i32>} : memref<2x128xf32, #tpu.memory_space<vmem>>, vector<2x1xf32>,
    return
  }
}

</mosaic_0001>

<llo_original>
// kernel: forward.1
$region0: #{forward.1}
  #allocation0 [shape = 'u32[]', space=smem, size = 0x4, offset = 0x4, fixed_abs, tag = 'smem constant byte address 0x4 - core index']
  #allocation1 [shape = 'u32[144,128]{1,0:T(1,128)}', space=vmem, size = 0x12000, scoped, tag = 'internal scratch']
  %s0 = inlined_call_operand.vmem [shape: f32[8,128], index: 0, kind: input, shape index: {}]
  %s1 = inlined_call_operand.vmem [shape: f32[472,144], index: 1, kind: input, shape index: {}]
  %s2 = inlined_call_operand.vmem [shape: f32[2,128], index: 2, kind: output, shape index: {}]
  %s3 = sld [smem:[#allocation0]]
  $region18: #{forward.1} parent=0
    _
  %s5 = ssub.s32 1, %s3
  %s6 = scalar_select 0, %s5, %s3
  // Predicated region
  $region2: #{forward.1} parent=0 // pred_check
    _
  $region3: #{forward.1} parent=0 // pred_check_branch
    %8 = sbr.rel (0) target = $region5
  $region4: #{forward.1} parent=0 // pred_region
    _
  $region5: #{forward.1} parent=0 // pred_fallthru
    _
  // Predicated region
  $region6: #{forward.1} parent=0 // pred_check
    _
  $region7: #{forward.1} parent=0 // pred_check_branch
    %10 = sbr.rel (0) target = $region9
  $region8: #{forward.1} parent=0 // pred_region
    _
  $region9: #{forward.1} parent=0 // pred_fallthru
    _
  %v11 = vld [vmem:[%s0] sm:$0xff]
  %v12 = vld [vmem:[%s1] sm:$0xff]
  %v13 = vld [vmem:[%s1 + $0x8] sm:$0xff]
  %v14 = vld [vmem:[%s1 + $0x10] sm:$0xff]
  %v15 = vld [vmem:[%s1 + $0x18] sm:$0xff]
  %v16 = vld [vmem:[%s1 + $0x20] sm:$0xff]
  %v17 = vld [vmem:[%s1 + $0x28] sm:$0xff]
  %v18 = vld [vmem:[%s1 + $0x30] sm:$0xff]
  %v19 = vld [vmem:[%s1 + $0x38] sm:$0xff]
  %v20 = vld [vmem:[%s1 + $0x40] sm:$0xff]
  %v21 = vld [vmem:[%s1 + $0x48] sm:$0xff]
  %v22 = vld [vmem:[%s1 + $0x50] sm:$0xff]
  %v23 = vld [vmem:[%s1 + $0x58] sm:$0xff]
  %v24 = vld [vmem:[%s1 + $0x60] sm:$0xff]
  %v25 = vld [vmem:[%s1 + $0x68] sm:$0xff]
  %v26 = vld [vmem:[%s1 + $0x70] sm:$0xff]
  %v27 = vld [vmem:[%s1 + $0x78] sm:$0xff]
  %v28 = vld [vmem:[%s1 + $0x80] sm:$0xff]
  %v29 = vld [vmem:[%s1 + $0x88] sm:$0xff]
  %v30 = vld [vmem:[%s1 + $0x90] sm:$0xff]
  %v31 = vld [vmem:[%s1 + $0x98] sm:$0xff]
  %v32 = vld [vmem:[%s1 + $0xa0] sm:$0xff]
  %v33 = vld [vmem:[%s1 + $0xa8] sm:$0xff]
  %v34 = vld [vmem:[%s1 + $0xb0] sm:$0xff]
  %v35 = vld [vmem:[%s1 + $0xb8] sm:$0xff]
  %v36 = vld [vmem:[%s1 + $0xc0] sm:$0xff]
  %v37 = vld [vmem:[%s1 + $0xc8] sm:$0xff]
  %v38 = vld [vmem:[%s1 + $0xd0] sm:$0xff]
  %v39 = vld [vmem:[%s1 + $0xd8] sm:$0xff]
  %v40 = vld [vmem:[%s1 + $0xe0] sm:$0xff]
  %v41 = vld [vmem:[%s1 + $0xe8] sm:$0xff]
  %v42 = vld [vmem:[%s1 + $0xf0] sm:$0xff]
  %v43 = vld [vmem:[%s1 + $0xf8] sm:$0xff]
  %44 = vmatprep.subr.mxu0 %v43
  %45 = vmatpush1.msra.mxu0 %v42
  %46 = vmatprep.subr.mxu0 %v41
  %47 = vmatpush1.msra.mxu0 %v40
  %48 = vmatprep.subr.mxu0 %v39
  %49 = vmatpush1.msra.mxu0 %v38
  %50 = vmatprep.subr.mxu0 %v37
  %51 = vmatpush1.msra.mxu0 %v36
  %52 = vmatprep.subr.mxu0 %v35
  %53 = vmatpush1.msra.mxu0 %v34
  %54 = vmatprep.subr.mxu0 %v33
  %55 = vmatpush1.msra.mxu0 %v32
  %56 = vmatprep.subr.mxu0 %v31
  %57 = vmatpush1.msra.mxu0 %v30
  %58 = vmatprep.subr.mxu0 %v29
  %59 = vmatpush1.msra.mxu0 %v28
  %60 = vmatprep.subr.mxu0 %v27
  %61 = vmatpush1.msra.mxu0 %v26
  %62 = vmatprep.subr.mxu0 %v25
  %63 = vmatpush1.msra.mxu0 %v24
  %64 = vmatprep.subr.mxu0 %v23
  %65 = vmatpush1.msra.mxu0 %v22
  %66 = vmatprep.subr.mxu0 %v21
  %67 = vmatpush1.msra.mxu0 %v20
  %68 = vmatprep.subr.mxu0 %v19
  %69 = vmatpush1.msra.mxu0 %v18
  %70 = vmatprep.subr.mxu0 %v17
  %71 = vmatpush1.msra.mxu0 %v16
  %72 = vmatprep.subr.mxu0 %v15
  %73 = vmatpush1.msra.mxu0 %v14
  %74 = vmatprep.subr.mxu0 %v13
  %75 = vmatpush1.msra.mxu0 %v12
  %76 = vmatprep.subr.mxu0 0.0
  %77 = vmatpush2.msra.mxu0 0.0
  %78 = vmatprep.subr.mxu0 0.0
  %79 = vmatpush2.msra.mxu0 0.0
  %80 = vmatprep.subr.mxu0 0.0
  %81 = vmatpush2.msra.mxu0 0.0
  %82 = vmatprep.subr.mxu0 0.0
  %83 = vmatpush2.msra.mxu0 0.0
  %84 = vmatprep.subr.mxu0 0.0
  %85 = vmatpush2.msra.mxu0 0.0
  %86 = vmatprep.subr.mxu0 0.0
  %87 = vmatpush2.msra.mxu0 0.0
  %88 = vmatprep.subr.mxu0 0.0
  %89 = vmatpush2.msra.mxu0 0.0
  %90 = vmatprep.subr.mxu0 0.0
  %91 = vmatpush2.msra.mxu0 0.0
  %92 = vmatprep.subr.mxu0 0.0
  %93 = vmatpush2.msra.mxu0 0.0
  %94 = vmatprep.subr.mxu0 0.0
  %95 = vmatpush2.msra.mxu0 0.0
  %96 = vmatprep.subr.mxu0 0.0
  %97 = vmatpush2.msra.mxu0 0.0
  %98 = vmatprep.subr.mxu0 0.0
  %99 = vmatpush2.msra.mxu0 0.0
  %100 = vmatprep.subr.mxu0 0.0
  %101 = vmatpush2.msra.mxu0 0.0
  %102 = vmatprep.subr.mxu0 0.0
  %103 = vmatpush2.msra.mxu0 0.0
  %104 = vmatprep.subr.mxu0 0.0
  %105 = vmatpush2.msra.mxu0 0.0
  %106 = vmatprep.subr.mxu0 0.0
  %107 = vmatpush2.msra.mxu0 0.0
  %108 = vmatprep.mubr.f32.mxu0 0.0
  %109 = vmatmul.mubr.f32.gmra.mxu0 %v11
  %v110 = vpop.f32.mrf.mxu0
  %v111 = vadd.f32 0.0, %v110
  %v112 = vpop.f32.mrf.mxu0
  %v113 = vadd.f32 0.0, %v112
  %114 = vdwg.mxu0
  %v117 = vrot.slane %v111, 2
  %v118 = vrot.slane %v113, 2
  %v121 = vmax.f32 %v111, %v117
  %v122 = vmax.f32 %v113, %v118
  %v125 = vrot.slane %v121, 4
  %v126 = vrot.slane %v122, 4
  %v129 = vmax.f32 %v121, %v125
  %v130 = vmax.f32 %v122, %v126
  %v131 = vmax.f32 %v129, 0.0
  %v132 = vmax.f32 %v130, 0.0
  %v133 = vld [vmem:[%s1 + $0x100] sm:$0xff]
  %v134 = vld [vmem:[%s1 + $0x110] sm:$0xff]
  %v135 = vld [vmem:[%s1 + $0x120] sm:$0xff]
  %v136 = vld [vmem:[%s1 + $0x130] sm:$0xff]
  %v137 = vld [vmem:[%s1 + $0x140] sm:$0xff]
  %v138 = vld [vmem:[%s1 + $0x150] sm:$0xff]
  %v139 = vld [vmem:[%s1 + $0x160] sm:$0xff]
  %v140 = vld [vmem:[%s1 + $0x170] sm:$0xff]
  %v141 = vld [vmem:[%s1 + $0x180] sm:$0xff]
  %v142 = vld [vmem:[%s1 + $0x190] sm:$0xff]
  %v143 = vld [vmem:[%s1 + $0x1a0] sm:$0xff]
  %v144 = vld [vmem:[%s1 + $0x1b0] sm:$0xff]
  %v145 = vld [vmem:[%s1 + $0x1c0] sm:$0xff]
  %v146 = vld [vmem:[%s1 + $0x1d0] sm:$0xff]
  %v147 = vld [vmem:[%s1 + $0x1e0] sm:$0xff]
  %v148 = vld [vmem:[%s1 + $0x1f0] sm:$0xff]
  %v149 = vld [vmem:[%s1 + $0x200] sm:$0xff]
  %v150 = vld [vmem:[%s1 + $0x210] sm:$0xff]
  %v151 = vld [vmem:[%s1 + $0x3a0] ss:$0 sm:$0xff]
  %vm152 = vcmask 130048
  %v154 = vsel %vm152, %v132, 0
  %156 = vmatprep.subr.mxu0 0.0
  %157 = vmatpush1.msra.mxu0 %v148
  %158 = vmatprep.subr.mxu0 0.0
  %159 = vmatpush1.msra.mxu0 %v147
  %160 = vmatprep.subr.mxu0 0.0
  %161 = vmatpush1.msra.mxu0 %v146
  %162 = vmatprep.subr.mxu0 0.0
  %163 = vmatpush1.msra.mxu0 %v145
  %164 = vmatprep.subr.mxu0 0.0
  %165 = vmatpush1.msra.mxu0 %v144
  %166 = vmatprep.subr.mxu0 0.0
  %167 = vmatpush1.msra.mxu0 %v143
  %168 = vmatprep.subr.mxu0 0.0
  %169 = vmatpush1.msra.mxu0 %v142
  %170 = vmatprep.subr.mxu0 0.0
  %171 = vmatpush1.msra.mxu0 %v141
  %172 = vmatprep.subr.mxu0 0.0
  %173 = vmatpush1.msra.mxu0 %v140
  %174 = vmatprep.subr.mxu0 0.0
  %175 = vmatpush1.msra.mxu0 %v139
  %176 = vmatprep.subr.mxu0 0.0
  %177 = vmatpush1.msra.mxu0 %v138
  %178 = vmatprep.subr.mxu0 0.0
  %179 = vmatpush1.msra.mxu0 %v137
  %180 = vmatprep.subr.mxu0 0.0
  %181 = vmatpush1.msra.mxu0 %v136
  %182 = vmatprep.subr.mxu0 0.0
  %183 = vmatpush1.msra.mxu0 %v135
  %184 = vmatprep.subr.mxu0 0.0
  %185 = vmatpush1.msra.mxu0 %v134
  %186 = vmatprep.subr.mxu0 0.0
  %187 = vmatpush1.msra.mxu0 %v133
  %188 = vmatprep.subr.mxu0 0.0
  %189 = vmatpush2.msra.mxu0 0.0
  %190 = vmatprep.subr.mxu0 0.0
  %191 = vmatpush2.msra.mxu0 0.0
  %192 = vmatprep.subr.mxu0 0.0
  %193 = vmatpush2.msra.mxu0 0.0
  %194 = vmatprep.subr.mxu0 0.0
  %195 = vmatpush2.msra.mxu0 0.0
  %196 = vmatprep.subr.mxu0 0.0
  %197 = vmatpush2.msra.mxu0 0.0
  %198 = vmatprep.subr.mxu0 0.0
  %199 = vmatpush2.msra.mxu0 0.0
  %200 = vmatprep.subr.mxu0 0.0
  %201 = vmatpush2.msra.mxu0 0.0
  %202 = vmatprep.subr.mxu0 0.0
  %203 = vmatpush2.msra.mxu0 0.0
  %204 = vmatprep.subr.mxu0 0.0
  %205 = vmatpush2.msra.mxu0 0.0
  %206 = vmatprep.subr.mxu0 0.0
  %207 = vmatpush2.msra.mxu0 0.0
  %208 = vmatprep.subr.mxu0 0.0
  %209 = vmatpush2.msra.mxu0 0.0
  %210 = vmatprep.subr.mxu0 0.0
  %211 = vmatpush2.msra.mxu0 0.0
  %212 = vmatprep.subr.mxu0 0.0
  %213 = vmatpush2.msra.mxu0 0.0
  %214 = vmatprep.subr.mxu0 0.0
  %215 = vmatpush2.msra.mxu0 0.0
  %216 = vmatprep.subr.mxu0 0.0
  %217 = vmatpush2.msra.mxu0 %v150
  %218 = vmatprep.subr.mxu0 0.0
  %219 = vmatpush2.msra.mxu0 %v149
  %220 = vmatprep.mubr.f32.mxu0 %v154
  %221 = vmatmul.mubr.f32.gmra.mxu0 %v131
  %v222 = vpop.f32.mrf.mxu0
  %v223 = vadd.f32 %v151, %v222
  %v224 = vpop.f32.mrf.mxu0
  %225 = vdwg.mxu0
  %v226 = vmax.f32 %v223, 0.0
  %v227 = vld [vmem:[%s1 + $0x220] sm:$0xff]
  %v228 = vld [vmem:[%s1 + $0x230] sm:$0xff]
  %v229 = vld [vmem:[%s1 + $0x240] sm:$0xff]
  %v230 = vld [vmem:[%s1 + $0x250] sm:$0xff]
  %v231 = vld [vmem:[%s1 + $0x260] sm:$0xff]
  %v232 = vld [vmem:[%s1 + $0x270] sm:$0xff]
  %v233 = vld [vmem:[%s1 + $0x280] sm:$0xff]
  %v234 = vld [vmem:[%s1 + $0x290] sm:$0xff]
  %v235 = vld [vmem:[%s1 + $0x2a0] sm:$0xff]
  %v236 = vld [vmem:[%s1 + $0x2b0] sm:$0xff]
  %v237 = vld [vmem:[%s1 + $0x2c0] sm:$0xff]
  %v238 = vld [vmem:[%s1 + $0x2d0] sm:$0xff]
  %v239 = vld [vmem:[%s1 + $0x2e0] sm:$0xff]
  %v240 = vld [vmem:[%s1 + $0x2f0] sm:$0xff]
  %v241 = vld [vmem:[%s1 + $0x300] sm:$0xff]
  %v242 = vld [vmem:[%s1 + $0x310] sm:$0xff]
  %v243 = vld [vmem:[%s1 + $0x3a1] ss:$0 sm:$0xff]
  %244 = vmatprep.subr.mxu0 0.0
  %245 = vmatpush1.msra.mxu0 %v242
  %246 = vmatprep.subr.mxu0 0.0
  %247 = vmatpush1.msra.mxu0 %v241
  %248 = vmatprep.subr.mxu0 0.0
  %249 = vmatpush1.msra.mxu0 %v240
  %250 = vmatprep.subr.mxu0 0.0
  %251 = vmatpush1.msra.mxu0 %v239
  %252 = vmatprep.subr.mxu0 0.0
  %253 = vmatpush1.msra.mxu0 %v238
  %254 = vmatprep.subr.mxu0 0.0
  %255 = vmatpush1.msra.mxu0 %v237
  %256 = vmatprep.subr.mxu0 0.0
  %257 = vmatpush1.msra.mxu0 %v236
  %258 = vmatprep.subr.mxu0 0.0
  %259 = vmatpush1.msra.mxu0 %v235
  %260 = vmatprep.subr.mxu0 0.0
  %261 = vmatpush1.msra.mxu0 %v234
  %262 = vmatprep.subr.mxu0 0.0
  %263 = vmatpush1.msra.mxu0 %v233
  %264 = vmatprep.subr.mxu0 0.0
  %265 = vmatpush1.msra.mxu0 %v232
  %266 = vmatprep.subr.mxu0 0.0
  %267 = vmatpush1.msra.mxu0 %v231
  %268 = vmatprep.subr.mxu0 0.0
  %269 = vmatpush1.msra.mxu0 %v230
  %270 = vmatprep.subr.mxu0 0.0
  %271 = vmatpush1.msra.mxu0 %v229
  %272 = vmatprep.subr.mxu0 0.0
  %273 = vmatpush1.msra.mxu0 %v228
  %274 = vmatprep.subr.mxu0 0.0
  %275 = vmatpush1.msra.mxu0 %v227
  %276 = vmatprep.subr.mxu0 0.0
  %277 = vmatpush2.msra.mxu0 0.0
  %278 = vmatprep.subr.mxu0 0.0
  %279 = vmatpush2.msra.mxu0 0.0
  %280 = vmatprep.subr.mxu0 0.0
  %281 = vmatpush2.msra.mxu0 0.0
  %282 = vmatprep.subr.mxu0 0.0
  %283 = vmatpush2.msra.mxu0 0.0
  %284 = vmatprep.subr.mxu0 0.0
  %285 = vmatpush2.msra.mxu0 0.0
  %286 = vmatprep.subr.mxu0 0.0
  %287 = vmatpush2.msra.mxu0 0.0
  %288 = vmatprep.subr.mxu0 0.0
  %289 = vmatpush2.msra.mxu0 0.0
  %290 = vmatprep.subr.mxu0 0.0
  %291 = vmatpush2.msra.mxu0 0.0
  %292 = vmatprep.subr.mxu0 0.0
  %293 = vmatpush2.msra.mxu0 0.0
  %294 = vmatprep.subr.mxu0 0.0
  %295 = vmatpush2.msra.mxu0 0.0
  %296 = vmatprep.subr.mxu0 0.0
  %297 = vmatpush2.msra.mxu0 0.0
  %298 = vmatprep.subr.mxu0 0.0
  %299 = vmatpush2.msra.mxu0 0.0
  %300 = vmatprep.subr.mxu0 0.0
  %301 = vmatpush2.msra.mxu0 0.0
  %302 = vmatprep.subr.mxu0 0.0
  %303 = vmatpush2.msra.mxu0 0.0
  %304 = vmatprep.subr.mxu0 0.0
  %305 = vmatpush2.msra.mxu0 0.0
  %306 = vmatprep.subr.mxu0 0.0
  %307 = vmatpush2.msra.mxu0 0.0
  %308 = vmatprep.mubr.f32.mxu0 0.0
  %309 = vmatmul.mubr.f32.gmra.mxu0 %v226
  %v310 = vpop.f32.mrf.mxu0
  %v311 = vadd.f32 %v243, %v310
  %v312 = vpop.f32.mrf.mxu0
  %313 = vdwg.mxu0
  %v314 = vmax.f32 %v311, 0.0
  %v315 = vld [vmem:[%s1 + $0x320] sm:$0xff]
  %v316 = vld [vmem:[%s1 + $0x330] sm:$0xff]
  %v317 = vld [vmem:[%s1 + $0x340] sm:$0xff]
  %v318 = vld [vmem:[%s1 + $0x350] sm:$0xff]
  %v319 = vld [vmem:[%s1 + $0x360] sm:$0xff]
  %v320 = vld [vmem:[%s1 + $0x370] sm:$0xff]
  %v321 = vld [vmem:[%s1 + $0x380] sm:$0xff]
  %v322 = vld [vmem:[%s1 + $0x390] sm:$0xff]
  %v323 = vld [vmem:[%s1 + $0x3a2] ss:$0 sm:$0xff]
  %vm324 = vcmask 523264
  %v326 = vsel %vm324, %v314, 0
  %328 = vmatprep.subr.mxu0 0.0
  %329 = vmatpush1.msra.mxu0 0.0
  %330 = vmatprep.subr.mxu0 0.0
  %331 = vmatpush1.msra.mxu0 0.0
  %332 = vmatprep.subr.mxu0 0.0
  %333 = vmatpush1.msra.mxu0 0.0
  %334 = vmatprep.subr.mxu0 0.0
  %335 = vmatpush1.msra.mxu0 0.0
  %336 = vmatprep.subr.mxu0 0.0
  %337 = vmatpush1.msra.mxu0 0.0
  %338 = vmatprep.subr.mxu0 0.0
  %339 = vmatpush1.msra.mxu0 0.0
  %340 = vmatprep.subr.mxu0 0.0
  %341 = vmatpush1.msra.mxu0 0.0
  %342 = vmatprep.subr.mxu0 0.0
  %343 = vmatpush1.msra.mxu0 0.0
  %344 = vmatprep.subr.mxu0 0.0
  %345 = vmatpush1.msra.mxu0 %v322
  %346 = vmatprep.subr.mxu0 0.0
  %347 = vmatpush1.msra.mxu0 %v321
  %348 = vmatprep.subr.mxu0 0.0
  %349 = vmatpush1.msra.mxu0 %v320
  %350 = vmatprep.subr.mxu0 0.0
  %351 = vmatpush1.msra.mxu0 %v319
  %352 = vmatprep.subr.mxu0 0.0
  %353 = vmatpush1.msra.mxu0 %v318
  %354 = vmatprep.subr.mxu0 0.0
  %355 = vmatpush1.msra.mxu0 %v317
  %356 = vmatprep.subr.mxu0 0.0
  %357 = vmatpush1.msra.mxu0 %v316
  %358 = vmatprep.subr.mxu0 0.0
  %359 = vmatpush1.msra.mxu0 %v315
  %360 = vmatprep.subr.mxu0 0.0
  %361 = vmatpush2.msra.mxu0 0.0
  %362 = vmatprep.subr.mxu0 0.0
  %363 = vmatpush2.msra.mxu0 0.0
  %364 = vmatprep.subr.mxu0 0.0
  %365 = vmatpush2.msra.mxu0 0.0
  %366 = vmatprep.subr.mxu0 0.0
  %367 = vmatpush2.msra.mxu0 0.0
  %368 = vmatprep.subr.mxu0 0.0
  %369 = vmatpush2.msra.mxu0 0.0
  %370 = vmatprep.subr.mxu0 0.0
  %371 = vmatpush2.msra.mxu0 0.0
  %372 = vmatprep.subr.mxu0 0.0
  %373 = vmatpush2.msra.mxu0 0.0
  %374 = vmatprep.subr.mxu0 0.0
  %375 = vmatpush2.msra.mxu0 0.0
  %376 = vmatprep.subr.mxu0 0.0
  %377 = vmatpush2.msra.mxu0 0.0
  %378 = vmatprep.subr.mxu0 0.0
  %379 = vmatpush2.msra.mxu0 0.0
  %380 = vmatprep.subr.mxu0 0.0
  %381 = vmatpush2.msra.mxu0 0.0
  %382 = vmatprep.subr.mxu0 0.0
  %383 = vmatpush2.msra.mxu0 0.0
  %384 = vmatprep.subr.mxu0 0.0
  %385 = vmatpush2.msra.mxu0 0.0
  %386 = vmatprep.subr.mxu0 0.0
  %387 = vmatpush2.msra.mxu0 0.0
  %388 = vmatprep.subr.mxu0 0.0
  %389 = vmatpush2.msra.mxu0 0.0
  %390 = vmatprep.subr.mxu0 0.0
  %391 = vmatpush2.msra.mxu0 0.0
  %392 = vmatprep.mubr.f32.mxu0 0.0
  %393 = vmatmul.mubr.f32.gmra.mxu0 %v326
  %v394 = vpop.f32.mrf.mxu0
  %v395 = vadd.f32 %v323, %v394
  %v396 = vpop.f32.mrf.mxu0
  %397 = vdwg.mxu0
  %v398 = vtanh.pop %v395
  %v399 = vld [vmem:[%s1 + $0x228] sm:$0xff]
  %v400 = vld [vmem:[%s1 + $0x238] sm:$0xff]
  %v401 = vld [vmem:[%s1 + $0x248] sm:$0xff]
  %v402 = vld [vmem:[%s1 + $0x258] sm:$0xff]
  %v403 = vld [vmem:[%s1 + $0x268] sm:$0xff]
  %v404 = vld [vmem:[%s1 + $0x278] sm:$0xff]
  %v405 = vld [vmem:[%s1 + $0x288] sm:$0xff]
  %v406 = vld [vmem:[%s1 + $0x298] sm:$0xff]
  %v407 = vld [vmem:[%s1 + $0x2a8] sm:$0xff]
  %v408 = vld [vmem:[%s1 + $0x2b8] sm:$0xff]
  %v409 = vld [vmem:[%s1 + $0x2c8] sm:$0xff]
  %v410 = vld [vmem:[%s1 + $0x2d8] sm:$0xff]
  %v411 = vld [vmem:[%s1 + $0x2e8] sm:$0xff]
  %v412 = vld [vmem:[%s1 + $0x2f8] sm:$0xff]
  %v413 = vld [vmem:[%s1 + $0x308] sm:$0xff]
  %v414 = vld [vmem:[%s1 + $0x318] sm:$0xff]
  %v415 = vld [vmem:[%s1 + $0x3a3] ss:$0 sm:$0xff]
  %416 = vmatprep.subr.mxu0 0.0
  %417 = vmatpush1.msra.mxu0 %v414
  %418 = vmatprep.subr.mxu0 0.0
  %419 = vmatpush1.msra.mxu0 %v413
  %420 = vmatprep.subr.mxu0 0.0
  %421 = vmatpush1.msra.mxu0 %v412
  %422 = vmatprep.subr.mxu0 0.0
  %423 = vmatpush1.msra.mxu0 %v411
  %424 = vmatprep.subr.mxu0 0.0
  %425 = vmatpush1.msra.mxu0 %v410
  %426 = vmatprep.subr.mxu0 0.0
  %427 = vmatpush1.msra.mxu0 %v409
  %428 = vmatprep.subr.mxu0 0.0
  %429 = vmatpush1.msra.mxu0 %v408
  %430 = vmatprep.subr.mxu0 0.0
  %431 = vmatpush1.msra.mxu0 %v407
  %432 = vmatprep.subr.mxu0 0.0
  %433 = vmatpush1.msra.mxu0 %v406
  %434 = vmatprep.subr.mxu0 0.0
  %435 = vmatpush1.msra.mxu0 %v405
  %436 = vmatprep.subr.mxu0 0.0
  %437 = vmatpush1.msra.mxu0 %v404
  %438 = vmatprep.subr.mxu0 0.0
  %439 = vmatpush1.msra.mxu0 %v403
  %440 = vmatprep.subr.mxu0 0.0
  %441 = vmatpush1.msra.mxu0 %v402
  %442 = vmatprep.subr.mxu0 0.0
  %443 = vmatpush1.msra.mxu0 %v401
  %444 = vmatprep.subr.mxu0 0.0
  %445 = vmatpush1.msra.mxu0 %v400
  %446 = vmatprep.subr.mxu0 0.0
  %447 = vmatpush1.msra.mxu0 %v399
  %448 = vmatprep.subr.mxu0 0.0
  %449 = vmatpush2.msra.mxu0 0.0
  %450 = vmatprep.subr.mxu0 0.0
  %451 = vmatpush2.msra.mxu0 0.0
  %452 = vmatprep.subr.mxu0 0.0
  %453 = vmatpush2.msra.mxu0 0.0
  %454 = vmatprep.subr.mxu0 0.0
  %455 = vmatpush2.msra.mxu0 0.0
  %456 = vmatprep.subr.mxu0 0.0
  %457 = vmatpush2.msra.mxu0 0.0
  %458 = vmatprep.subr.mxu0 0.0
  %459 = vmatpush2.msra.mxu0 0.0
  %460 = vmatprep.subr.mxu0 0.0
  %461 = vmatpush2.msra.mxu0 0.0
  %462 = vmatprep.subr.mxu0 0.0
  %463 = vmatpush2.msra.mxu0 0.0
  %464 = vmatprep.subr.mxu0 0.0
  %465 = vmatpush2.msra.mxu0 0.0
  %466 = vmatprep.subr.mxu0 0.0
  %467 = vmatpush2.msra.mxu0 0.0
  %468 = vmatprep.subr.mxu0 0.0
  %469 = vmatpush2.msra.mxu0 0.0
  %470 = vmatprep.subr.mxu0 0.0
  %471 = vmatpush2.msra.mxu0 0.0
  %472 = vmatprep.subr.mxu0 0.0
  %473 = vmatpush2.msra.mxu0 0.0
  %474 = vmatprep.subr.mxu0 0.0
  %475 = vmatpush2.msra.mxu0 0.0
  %476 = vmatprep.subr.mxu0 0.0
  %477 = vmatpush2.msra.mxu0 0.0
  %478 = vmatprep.subr.mxu0 0.0
  %479 = vmatpush2.msra.mxu0 0.0
  %480 = vmatprep.mubr.f32.mxu0 0.0
  %481 = vmatmul.mubr.f32.gmra.mxu0 %v398
  %v482 = vpop.f32.mrf.mxu0
  %v483 = vadd.f32 %v415, %v482
  %v484 = vpop.f32.mrf.mxu0
  %485 = vdwg.mxu0
  %487 = vset.pattern.permute.xlu0 124
  %488 = vperm.xlu0 %487, %v11
  %v489 = vpop.permute.xlu0 %488
  %v491 = vlaneseq
  %v492 = vshrl.u32 %v491, 7
  %v493 = vsub.s32 0, %v492
  %v494 = vrot.slane %v483, %v493
  %v495 = vmul.f32 %v489, %v494
  %496 = vset.pattern.permute.xlu0 125
  %497 = vperm.xlu0 %496, %v11
  %v498 = vpop.permute.xlu0 %497
  %v500 = vmul.f32 %v498, %v494
  %502 = vrot.lane.b32.xlu0 %v500, 126
  %v503 = vpop.permute.xlu0 %502
  %v505 = vadd.f32 %v495, %v503
  %506 = vset.pattern.permute.xlu0 126
  %507 = vperm.xlu0 %506, %v11
  %v508 = vpop.permute.xlu0 %507
  %v510 = vmul.f32 %v508, %v494
  %512 = vrot.lane.b32.xlu0 %v510, 124
  %v513 = vpop.permute.xlu0 %512
  %v515 = vadd.f32 %v505, %v513
  %516 = vset.pattern.permute.xlu0 127
  %517 = vperm.xlu0 %516, %v11
  %v518 = vpop.permute.xlu0 %517
  %v520 = vmul.f32 %v518, %v494
  %522 = vrot.lane.b32.xlu0 %v520, 122
  %v523 = vpop.permute.xlu0 %522
  %v525 = vadd.f32 %v515, %v523
  %vm526 = vcmask 9216
  %v527 = vsel %vm526, %v525, -inf
  %528 = vmax.xlane.f32.xlu0 %v527
  %v529 = vpop.xlane.xlu0 %528
  %v530 = vsub.f32 %v525, %v529
  %v531 = vmul.f32 %v530, 1.442695
  %v532 = vpow.pop %v531
  %v533 = vsel %vm526, %v532, 0.0
  %534 = vadd.xlane.f32.xlu0 %v533
  %v535 = vpop.xlane.xlu0 %534
  %v536 = vlog2.pop %v535
  %v537 = vmul.f32 %v536, 0.6931472
  %538 = vst [vmem:[%s2] sm:$0x3] 0.0
  %v539 = vsub.f32 %v530, %v537
  %540 = vst.msk [vmem:[%s2] sm:$0x3] %vm526, %v539
  %542 = vrot.lane.b32.xlu0 %v483, 122
  %v543 = vpop.permute.xlu0 %542
  %vm545 = vcmask 17424
  %546 = vst.msk [vmem:[%s2] sm:$0x3] %vm545, %v543
  // Predicated region
  $region10: #{forward.1} parent=0 // pred_check
    _
  $region11: #{forward.1} parent=0 // pred_check_branch
    %548 = sbr.rel (0) target = $region13
  $region12: #{forward.1} parent=0 // pred_region
    _
  $region13: #{forward.1} parent=0 // pred_fallthru
    _
  // Predicated region
  $region14: #{forward.1} parent=0 // pred_check
    _
  $region15: #{forward.1} parent=0 // pred_check_branch
    %550 = sbr.rel (0) target = $region17
  $region16: #{forward.1} parent=0 // pred_region
    _
  $region17: #{forward.1} parent=0 // pred_fallthru
    _

</llo_original>
